<compile_context>
chip_gen: v7x
topology: tpu7x:2x2x1
jax: 0.10.0
libtpu: 0.0.40
codegen_flags: <defaults>
</compile_context>

<pallas_src>
import jax
import jax.numpy as jnp
from jax.experimental import pallas as pl
from jax.experimental.pallas import tpu as pltpu


def gcn_parent_kernel(adj_ref, xk_ref, xi_ref, w_ref, b_ref, o_ref, acc_ref):
    """Grid = (row tiles, k reduction tiles).  acc_ref holds parent_emb (f32)."""
    k = pl.program_id(1)

    @pl.when(k == 0)
    def _init():
        acc_ref[...] = jnp.zeros_like(acc_ref)

    # parent_emb accumulation: adj[i-tile, k-tile] @ x[k-tile, :]
    acc_ref[...] += jnp.dot(adj_ref[...], xk_ref[...],
                            preferred_element_type=jnp.float32)

    @pl.when(k == pl.num_programs(1) - 1)
    def _finalize():
        xi = xi_ref[...]                                   # (tm, D) row tile of x
        parent = acc_ref[...].astype(xi.dtype)             # (tm, D)
        # Fused K=2D matmul: [x, parent_emb] @ [w_self; w_parent]  (one MXU pass)
        fused = jnp.concatenate([xi, parent], axis=-1)     # (tm, 2D)
        res = jnp.dot(fused, w_ref[...], preferred_element_type=jnp.float32)
        # bias + ReLU fused into one VPU pass over the (tm, H) tile.
        o_ref[...] = jnp.maximum(res + b_ref[...], 0.0).astype(o_ref.dtype)


def _pick_tile(n, target, align):
    """Largest divisor of n that is <= target and a multiple of `align`
    (or n itself when n <= target / no aligned divisor exists)."""
    if n <= target:
        return n
    for t in range(min(target, n), 0, -1):
        if n % t == 0 and t % align == 0:
            return t
    return n


def gcn_parent_forward(adj_parent, label_matrix, w_self, w_parent, bias, *,
                       compute_dtype=jnp.float32, tm=None, tk=None):
    """Pallas GCNParent forward.

    adj_parent: (N, N), label_matrix: (N, D), w_self/w_parent: (D, H), bias: (H,)
    Returns f32 (N, H).  compute_dtype controls MXU input dtype (f32 or bf16),
    accumulation is always f32.
    """
    N, D = label_matrix.shape
    H = w_self.shape[1]

    # Row tile / reduction tile.  Last dim of the adj block (tk) must be a
    # multiple of 128 (or == N); row tiles a multiple of 8 (or == N).
    if tm is None:
        tm = _pick_tile(N, 256, 8)
    if tk is None:
        tk = _pick_tile(N, 512, 128)
    assert N % tm == 0 and N % tk == 0, (N, tm, tk)

    adj = adj_parent.astype(compute_dtype)
    x = label_matrix.astype(compute_dtype)
    # Weights are static per layer: build the fused (2D, H) weight once here.
    w_comb = jnp.concatenate([w_self, w_parent], axis=0).astype(compute_dtype)
    bias2d = bias.reshape(1, H).astype(jnp.float32)

    grid = (N // tm, N // tk)  # reduction axis last

    return pl.pallas_call(
        gcn_parent_kernel,
        out_shape=jax.ShapeDtypeStruct((N, H), jnp.float32),
        grid_spec=pltpu.PrefetchScalarGridSpec(
            num_scalar_prefetch=0,
            grid=grid,
            in_specs=[
                pl.BlockSpec((tm, tk), lambda i, k: (i, k)),    # adj_parent tile
                pl.BlockSpec((tk, D), lambda i, k: (k, 0)),     # x rows (reduction)
                pl.BlockSpec((tm, D), lambda i, k: (i, 0)),     # x rows (self term)
                pl.BlockSpec((2 * D, H), lambda i, k: (0, 0)),  # fused weights
                pl.BlockSpec((1, H), lambda i, k: (0, 0)),      # bias
            ],
            out_specs=pl.BlockSpec((tm, H), lambda i, k: (i, 0)),
            scratch_shapes=[pltpu.VMEM((tm, D), jnp.float32)],  # parent_emb acc
        ),
        compiler_params=pltpu.CompilerParams(
            dimension_semantics=("parallel", "arbitrary"),
        ),
    )(adj, x, x, w_comb, bias2d)


def make_params(key, input_dim, hid_q):
    """Deterministic kaiming_normal-style init (matches nn.init.kaiming_normal_
    on a (input_dim, hid_q) tensor: fan_in = hid_q, gain = sqrt(2))."""
    k1, k2 = jax.random.split(key)
    std = (2.0 / hid_q) ** 0.5
    w_self = std * jax.random.normal(k1, (input_dim, hid_q), dtype=jnp.float32)
    w_parent = std * jax.random.normal(k2, (input_dim, hid_q), dtype=jnp.float32)
    bias = jnp.zeros((hid_q,), dtype=jnp.float32)
    return w_self, w_parent, bias


def _reference(adj, x, ws, wp, b):
    parent = adj @ x
    return jnp.maximum(x @ ws + parent @ wp + b, 0.0)


if __name__ == "__main__":
    key = jax.random.PRNGKey(0)
    D, H = 32, 128

    # ---------- Test 1: module-sized small problem, f32 ----------
    N = 8
    k_adj, k_lbl, k_par = jax.random.split(key, 3)
    adj_raw = jax.random.uniform(k_adj, (N, N), dtype=jnp.float32)
    adj_parent = adj_raw / jnp.sum(adj_raw, axis=1, keepdims=True)
    label_matrix = jax.random.normal(k_lbl, (N, D), dtype=jnp.float32)
    w_self, w_parent, bias = make_params(k_par, D, H)

    out = jax.block_until_ready(
        gcn_parent_forward(adj_parent, label_matrix, w_self, w_parent, bias))
    ref = _reference(adj_parent, label_matrix, w_self, w_parent, bias)
    assert out.shape == (N, H)
    assert jnp.allclose(out, ref, atol=1e-5, rtol=1e-5)

    # ---------- Test 2: larger N exercising the tiled grid + accumulator ----------
    N2 = 256
    k_adj2, k_lbl2 = jax.random.split(jax.random.PRNGKey(1), 2)
    adj2_raw = jax.random.uniform(k_adj2, (N2, N2), dtype=jnp.float32)
    adj2 = adj2_raw / jnp.sum(adj2_raw, axis=1, keepdims=True)
    x2 = jax.random.normal(k_lbl2, (N2, D), dtype=jnp.float32)

    out2 = jax.block_until_ready(
        gcn_parent_forward(adj2, x2, w_self, w_parent, bias, tm=128, tk=128))
    ref2 = _reference(adj2, x2, w_self, w_parent, bias)
    assert out2.shape == (N2, H)
    assert jnp.allclose(out2, ref2, atol=1e-4, rtol=1e-4)

    # ---------- Test 3: bf16 MXU path (f32 accumulation), loose tolerance ----------
    out_bf16 = jax.block_until_ready(
        gcn_parent_forward(adj_parent, label_matrix, w_self, w_parent, bias,
                           compute_dtype=jnp.bfloat16))
    assert jnp.allclose(out_bf16, ref, atol=5e-2, rtol=5e-2)

    print("KERNEL_OK")
</pallas_src>

<mosaic_0001>
module attributes {stable_mosaic.version = 11 : i64} {
  func.func @gcn_parent_kernel(%arg0: i32, %arg1: i32, %arg2: memref<8x8xf32, #tpu.memory_space<vmem>>, %arg3: memref<8x32xf32, #tpu.memory_space<vmem>>, %arg4: memref<8x32xf32, #tpu.memory_space<vmem>>, %arg5: memref<64x128xf32, #tpu.memory_space<vmem>>, %arg6: memref<1x128xf32, #tpu.memory_space<vmem>>, %arg7: memref<8x128xf32, #tpu.memory_space<vmem>>, %arg8: memref<8x32xf32, #tpu.memory_space<vmem>>) attributes {dimension_semantics = [#tpu.dimension_semantics<parallel>, #tpu.dimension_semantics<arbitrary>], iteration_bounds = array<i64: 1, 1>, scalar_prefetch = 0 : i64, scratch_operands = 1 : i64, tpu.core_type = #tpu.core_type<tc>, window_params = [{transform_indices = @transform_0, window_bounds = array<i64: 8, 8>}, {transform_indices = @transform_1, window_bounds = array<i64: 8, 32>}, {transform_indices = @transform_2, window_bounds = array<i64: 8, 32>}, {pipeline_mode = #tpu.pipeline_mode<synchronous>, transform_indices = @transform_3, window_bounds = array<i64: 64, 128>}, {pipeline_mode = #tpu.pipeline_mode<synchronous>, transform_indices = @transform_4, window_bounds = array<i64: 1, 128>}, {transform_indices = @transform_5, window_bounds = array<i64: 8, 128>}]} {
    %c0_i32 = arith.constant 0 : i32
    %0 = arith.cmpi eq, %arg1, %c0_i32 : i32
    %1 = arith.extui %0 : i1 to i32
    %c0_i32_0 = arith.constant 0 : i32
    %2 = arith.cmpi ne, %1, %c0_i32_0 : i32
    scf.if %2 {
      %cst_10 = arith.constant 0.000000e+00 : f32
      %12 = vector.broadcast %cst_10 : f32 to vector<8x32xf32>
      %c0_11 = arith.constant 0 : index
      %c0_12 = arith.constant 0 : index
      %13 = vector.load %arg8[%c0_11, %c0_12] : memref<8x32xf32, #tpu.memory_space<vmem>>, vector<8x32xf32>
      tpu.vector_store %arg8[%c0_11, %c0_12], %12 {strides = array<i32>} : memref<8x32xf32, #tpu.memory_space<vmem>>, vector<8x32xf32>,
    } else {
    }
    %c0 = arith.constant 0 : index
    %c0_1 = arith.constant 0 : index
    %3 = vector.load %arg8[%c0, %c0_1] : memref<8x32xf32, #tpu.memory_space<vmem>>, vector<8x32xf32>
    %c0_2 = arith.constant 0 : index
    %c0_3 = arith.constant 0 : index
    %4 = vector.load %arg2[%c0_2, %c0_3] : memref<8x8xf32, #tpu.memory_space<vmem>>, vector<8x8xf32>
    %c0_4 = arith.constant 0 : index
    %c0_5 = arith.constant 0 : index
    %5 = vector.load %arg3[%c0_4, %c0_5] : memref<8x32xf32, #tpu.memory_space<vmem>>, vector<8x32xf32>
    %cst = arith.constant dense<0.000000e+00> : vector<8x32xf32>
    %6 = tpu.matmul %4, %5, %cst {dimension_numbers = #tpu.dot_dimension_numbers<[1], [0], [0], [1], [0, 0, 1, 1], [], []>} : vector<8x8xf32>, vector<8x32xf32>, vector<8x32xf32> -> vector<8x32xf32>
    %7 = arith.addf %3, %6 : vector<8x32xf32>
    %c0_6 = arith.constant 0 : index
    %c0_7 = arith.constant 0 : index
    %8 = vector.load %arg8[%c0_6, %c0_7] : memref<8x32xf32, #tpu.memory_space<vmem>>, vector<8x32xf32>
    tpu.vector_store %arg8[%c0_6, %c0_7], %7 {strides = array<i32>} : memref<8x32xf32, #tpu.memory_space<vmem>>, vector<8x32xf32>,
    %c0_i32_8 = arith.constant 0 : i32
    %9 = arith.cmpi eq, %arg1, %c0_i32_8 : i32
    %10 = arith.extui %9 : i1 to i32
    %c0_i32_9 = arith.constant 0 : i32
    %11 = arith.cmpi ne, %10, %c0_i32_9 : i32
    scf.if %11 {
      %c0_10 = arith.constant 0 : index
      %c0_11 = arith.constant 0 : index
      %12 = vector.load %arg4[%c0_10, %c0_11] : memref<8x32xf32, #tpu.memory_space<vmem>>, vector<8x32xf32>
      %c0_12 = arith.constant 0 : index
      %c0_13 = arith.constant 0 : index
      %13 = vector.load %arg8[%c0_12, %c0_13] : memref<8x32xf32, #tpu.memory_space<vmem>>, vector<8x32xf32>
      %14 = tpu.concatenate %12, %13 in 1 : vector<8x32xf32>, vector<8x32xf32> -> vector<8x64xf32>
      %c0_14 = arith.constant 0 : index
      %c0_15 = arith.constant 0 : index
      %15 = vector.load %arg5[%c0_14, %c0_15] : memref<64x128xf32, #tpu.memory_space<vmem>>, vector<64x128xf32>
      %cst_16 = arith.constant dense<0.000000e+00> : vector<8x128xf32>
      %16 = tpu.matmul %14, %15, %cst_16 {dimension_numbers = #tpu.dot_dimension_numbers<[1], [0], [0], [1], [0, 0, 1, 1], [], []>} : vector<8x64xf32>, vector<64x128xf32>, vector<8x128xf32> -> vector<8x128xf32>
      %c0_17 = arith.constant 0 : index
      %c0_18 = arith.constant 0 : index
      %17 = vector.load %arg6[%c0_17, %c0_18] : memref<1x128xf32, #tpu.memory_space<vmem>>, vector<1x128xf32>
      %18 = vector.broadcast %17 : vector<1x128xf32> to vector<8x128xf32>
      %19 = arith.addf %16, %18 : vector<8x128xf32>
      %cst_19 = arith.constant 0.000000e+00 : f32
      %20 = vector.broadcast %cst_19 : f32 to vector<8x128xf32>
      %21 = arith.maximumf %19, %20 : vector<8x128xf32>
      %c0_20 = arith.constant 0 : index
      %c0_21 = arith.constant 0 : index
      %22 = vector.load %arg7[%c0_20, %c0_21] : memref<8x128xf32, #tpu.memory_space<vmem>>, vector<8x128xf32>
      tpu.vector_store %arg7[%c0_20, %c0_21], %21 {strides = array<i32>} : memref<8x128xf32, #tpu.memory_space<vmem>>, vector<8x128xf32>,
    } else {
    }
    return
  }
  func.func @transform_0(%arg0: i32, %arg1: i32) -> (i32, i32) {
    %c0_i32 = arith.constant 0 : i32
    return %arg0, %arg1 : i32, i32
  }
  func.func @transform_1(%arg0: i32, %arg1: i32) -> (i32, i32) {
    %c0_i32 = arith.constant 0 : i32
    %c0_i32_0 = arith.constant 0 : i32
    return %arg1, %c0_i32 : i32, i32
  }
  func.func @transform_2(%arg0: i32, %arg1: i32) -> (i32, i32) {
    %c0_i32 = arith.constant 0 : i32
    %c0_i32_0 = arith.constant 0 : i32
    return %arg0, %c0_i32 : i32, i32
  }
  func.func @transform_3(%arg0: i32, %arg1: i32) -> (i32, i32) {
    %c0_i32 = arith.constant 0 : i32
    %c0_i32_0 = arith.constant 0 : i32
    %c0_i32_1 = arith.constant 0 : i32
    return %c0_i32, %c0_i32_0 : i32, i32
  }
  func.func @transform_4(%arg0: i32, %arg1: i32) -> (i32, i32) {
    %c0_i32 = arith.constant 0 : i32
    %c0_i32_0 = arith.constant 0 : i32
    %c0_i32_1 = arith.constant 0 : i32
    return %c0_i32, %c0_i32_0 : i32, i32
  }
  func.func @transform_5(%arg0: i32, %arg1: i32) -> (i32, i32) {
    %c0_i32 = arith.constant 0 : i32
    %c0_i32_0 = arith.constant 0 : i32
    return %arg0, %c0_i32 : i32, i32
  }
}

</mosaic_0001>

<llo_original>
// kernel: tpu_custom_call.1
$region0: #{tpu_custom_call.1}
  #allocation0 [shape = 'u32[]', space=smem, size = 0x4, offset = 0x4, fixed_abs, tag = 'smem constant byte address 0x4 - core index']
  #allocation1 [shape = 'u32[144,128]{1,0:T(1,128)}', space=vmem, size = 0x12000, scoped, tag = 'internal scratch']
  #allocation2 [shape = 'f32[8,32]{1,0:T(8,128)}', space=vmem, size = 0x1000, scoped, tag = 'scratch operand']
  %s0 = inlined_call_operand.hbm [shape: f32[8,8], index: 0, kind: input, shape index: {}]
  %s1 = inlined_call_operand.hbm [shape: f32[8,32], index: 1, kind: input, shape index: {}]
  %s2 = inlined_call_operand.hbm [shape: f32[8,32], index: 2, kind: input, shape index: {}]
  %s3 = inlined_call_operand.hbm [shape: f32[64,128], index: 3, kind: input, shape index: {}]
  %s4 = inlined_call_operand.vmem [shape: f32[1,128], index: 4, kind: input, shape index: {}]
  %s5 = inlined_call_operand.hbm [shape: f32[8,128], index: 5, kind: output, shape index: {}]
  %s6 = sld [smem:[#allocation0]]
  $region54: #{tpu_custom_call.1} parent=0
    _
  %s8 = ssub.s32 1, %s6
  %s9 = scalar_select 0, %s8, %s6
  $region1: #{tpu_custom_call.1} parent=0
    #allocation3 [shape = 'u8[4096]{0}', space=vmem, size = 0x1000, scoped, tag = 'input window, operand 0, single buffered']
    #allocation4 [shape = 's32[1]{0}', space=sflag, size = 0x4, scoped, tag = 'scoped memory for tpu_custom_call.1']
    #allocation5 [shape = 's32[1]{0}', space=sflag, size = 0x4, scoped, tag = 'scoped memory for tpu_custom_call.1']
    #allocation6 [shape = 'u8[4096]{0}', space=vmem, size = 0x1000, scoped, tag = 'input window, operand 1, single buffered']
    #allocation7 [shape = 's32[1]{0}', space=sflag, size = 0x4, scoped, tag = 'scoped memory for tpu_custom_call.1']
    #allocation8 [shape = 'u8[4096]{0}', space=vmem, size = 0x1000, scoped, tag = 'input window, operand 2, single buffered']
    #allocation9 [shape = 'u8[32768]{0}', space=vmem, size = 0x8000, scoped, tag = 'input window, operand 3, single buffered']
    #allocation10 [shape = 's32[1]{0}', space=sflag, size = 0x4, scoped, tag = 'scoped memory for tpu_custom_call.1']
    #allocation11 [shape = 'u8[4096]{0}', space=vmem, size = 0x1000, scoped, tag = 'output window, operand 0, single buffered']
    %10 = vsyncpa [#allocation4], 0
    %11 = vsyncpa [#allocation7], 0
    %12 = vsyncpa [#allocation10], 0
    %13 = vsyncpa [#allocation5], 0
    // Predicated region
    $region2: #{tpu_custom_call.1} parent=1 // pred_check
      _
    $region3: #{tpu_custom_call.1} parent=1 // pred_check_branch
      %15 = sbr.rel (0) target = $region5
    $region4: #{tpu_custom_call.1} parent=1 // pred_region
      %s17 = ssub.s32 128, 128
      %18 = vsyncadd [#allocation4], %s17
      %s20 = sshll.u32 [#allocation3], 4
      %s21 = int_to_ptr.vmem [resolvable:$true] %s20
      %23 = dma.hbm_to_vmem [thread:$0]  %s0, 128, %s21, [#allocation4]
    $region5: #{tpu_custom_call.1} parent=1 // pred_fallthru
      _
    // Predicated region
    $region6: #{tpu_custom_call.1} parent=1 // pred_check
      _
    $region7: #{tpu_custom_call.1} parent=1 // pred_check_branch
      %25 = sbr.rel (0) target = $region9
    $region8: #{tpu_custom_call.1} parent=1 // pred_region
      %s27 = ssub.s32 128, 128
      %28 = vsyncadd [#allocation7], %s27
      %s30 = sshll.u32 [#allocation6], 4
      %s31 = int_to_ptr.vmem [resolvable:$true] %s30
      %33 = dma.hbm_to_vmem [thread:$0]  %s1, 128, %s31, [#allocation7]
    $region9: #{tpu_custom_call.1} parent=1 // pred_fallthru
      _
    // Predicated region
    $region10: #{tpu_custom_call.1} parent=1 // pred_check
      _
    $region11: #{tpu_custom_call.1} parent=1 // pred_check_branch
      %35 = sbr.rel (0) target = $region13
    $region12: #{tpu_custom_call.1} parent=1 // pred_region
      %s37 = ssub.s32 128, 128
      %38 = vsyncadd [#allocation7], %s37
      %s40 = sshll.u32 [#allocation8], 4
      %s41 = int_to_ptr.vmem [resolvable:$true] %s40
      %43 = dma.hbm_to_vmem [thread:$0]  %s2, 128, %s41, [#allocation7]
    $region13: #{tpu_custom_call.1} parent=1 // pred_fallthru
      _
    // Predicated region
    $region14: #{tpu_custom_call.1} parent=1 // pred_check
      _
    $region15: #{tpu_custom_call.1} parent=1 // pred_check_branch
      %45 = sbr.rel (0) target = $region17
    $region16: #{tpu_custom_call.1} parent=1 // pred_region
      %s47 = ssub.s32 1024, 1024
      %48 = vsyncadd [#allocation10], %s47
      %s49 = sshll.u32 [#allocation9], 4
      %s50 = int_to_ptr.vmem [resolvable:$true] %s49
      %55 = dma.hbm_to_vmem [thread:$0]  %s3, 1024, %s50, [#allocation10], 128, 128, 8
    $region17: #{tpu_custom_call.1} parent=1 // pred_fallthru
      _
    // Predicated region
    $region18: #{tpu_custom_call.1} parent=1 // pred_check
      _
    $region19: #{tpu_custom_call.1} parent=1 // pred_check_branch
      %57 = sbr.rel (0) target = $region21
    $region20: #{tpu_custom_call.1} parent=1 // pred_region
      _
    $region21: #{tpu_custom_call.1} parent=1 // pred_fallthru
      _
    // Predicated region
    $region22: #{tpu_custom_call.1} parent=1 // pred_check
      _
    $region23: #{tpu_custom_call.1} parent=1 // pred_check_branch
      %59 = sbr.rel (0) target = $region25
    $region24: #{tpu_custom_call.1} parent=1 // pred_region
      %60 = dma.done [#allocation4], 128
    $region25: #{tpu_custom_call.1} parent=1 // pred_fallthru
      _
    // Predicated region
    $region26: #{tpu_custom_call.1} parent=1 // pred_check
      _
    $region27: #{tpu_custom_call.1} parent=1 // pred_check_branch
      %62 = sbr.rel (0) target = $region29
    $region28: #{tpu_custom_call.1} parent=1 // pred_region
      %63 = dma.done [#allocation7], 128
    $region29: #{tpu_custom_call.1} parent=1 // pred_fallthru
      _
    // Predicated region
    $region30: #{tpu_custom_call.1} parent=1 // pred_check
      _
    $region31: #{tpu_custom_call.1} parent=1 // pred_check_branch
      %65 = sbr.rel (0) target = $region33
    $region32: #{tpu_custom_call.1} parent=1 // pred_region
      %66 = dma.done [#allocation7], 128
    $region33: #{tpu_custom_call.1} parent=1 // pred_fallthru
      _
    // Predicated region
    $region34: #{tpu_custom_call.1} parent=1 // pred_check
      _
    $region35: #{tpu_custom_call.1} parent=1 // pred_check_branch
      %68 = sbr.rel (0) target = $region37
    $region36: #{tpu_custom_call.1} parent=1 // pred_region
      %69 = dma.done [#allocation10], 1024
    $region37: #{tpu_custom_call.1} parent=1 // pred_fallthru
      _
    %p70 = scmp.eq.s32.totalorder 0, 0
    // Predicated region
    $region38: #{tpu_custom_call.1} parent=1 // pred_check
      %p71 = pneg %p70
    $region39: #{tpu_custom_call.1} parent=1 // pred_check_branch
      %73 = sbr.rel (%p71) target = $region41
    $region40: #{tpu_custom_call.1} parent=1 // pred_region
      %vm74 = vcmask 261120
      %75 = vst.msk [vmem:[#allocation2] sm:$0xff] %vm74, 0.0
    $region41: #{tpu_custom_call.1} parent=1 // pred_fallthru
      _
    %v76 = vld [vmem:[#allocation2] sm:$0xff]
    %v77 = vld [vmem:[#allocation3] sm:$0xff]
    %v78 = vld [vmem:[#allocation6] sm:$0xff]
    %vm79 = vcmask 64512
    %v81 = vsel %vm79, %v77, 0
    %83 = vmatprep.subr.mxu0 0.0
    %84 = vmatpush1.msra.mxu0 %v78
    %85 = vmatprep.subr.mxu0 0.0
    %86 = vmatpush1.msra.mxu0 0.0
    %87 = vmatprep.subr.mxu0 0.0
    %88 = vmatpush1.msra.mxu0 0.0
    %89 = vmatprep.subr.mxu0 0.0
    %90 = vmatpush1.msra.mxu0 0.0
    %91 = vmatprep.subr.mxu0 0.0
    %92 = vmatpush1.msra.mxu0 0.0
    %93 = vmatprep.subr.mxu0 0.0
    %94 = vmatpush1.msra.mxu0 0.0
    %95 = vmatprep.subr.mxu0 0.0
    %96 = vmatpush1.msra.mxu0 0.0
    %97 = vmatprep.subr.mxu0 0.0
    %98 = vmatpush1.msra.mxu0 0.0
    %99 = vmatprep.subr.mxu0 0.0
    %100 = vmatpush1.msra.mxu0 0.0
    %101 = vmatprep.subr.mxu0 0.0
    %102 = vmatpush1.msra.mxu0 0.0
    %103 = vmatprep.subr.mxu0 0.0
    %104 = vmatpush1.msra.mxu0 0.0
    %105 = vmatprep.subr.mxu0 0.0
    %106 = vmatpush1.msra.mxu0 0.0
    %107 = vmatprep.subr.mxu0 0.0
    %108 = vmatpush1.msra.mxu0 0.0
    %109 = vmatprep.subr.mxu0 0.0
    %110 = vmatpush1.msra.mxu0 0.0
    %111 = vmatprep.subr.mxu0 0.0
    %112 = vmatpush1.msra.mxu0 0.0
    %113 = vmatprep.subr.mxu0 0.0
    %114 = vmatpush1.msra.mxu0 0.0
    %115 = vmatprep.subr.mxu0 0.0
    %116 = vmatpush1.msra.mxu0 0.0
    %117 = vmatprep.subr.mxu0 0.0
    %118 = vmatpush1.msra.mxu0 0.0
    %119 = vmatprep.subr.mxu0 0.0
    %120 = vmatpush1.msra.mxu0 0.0
    %121 = vmatprep.subr.mxu0 0.0
    %122 = vmatpush1.msra.mxu0 0.0
    %123 = vmatprep.subr.mxu0 0.0
    %124 = vmatpush1.msra.mxu0 0.0
    %125 = vmatprep.subr.mxu0 0.0
    %126 = vmatpush1.msra.mxu0 0.0
    %127 = vmatprep.subr.mxu0 0.0
    %128 = vmatpush1.msra.mxu0 0.0
    %129 = vmatprep.subr.mxu0 0.0
    %130 = vmatpush1.msra.mxu0 0.0
    %131 = vmatprep.subr.mxu0 0.0
    %132 = vmatpush1.msra.mxu0 0.0
    %133 = vmatprep.subr.mxu0 0.0
    %134 = vmatpush1.msra.mxu0 0.0
    %135 = vmatprep.subr.mxu0 0.0
    %136 = vmatpush1.msra.mxu0 0.0
    %137 = vmatprep.subr.mxu0 0.0
    %138 = vmatpush1.msra.mxu0 0.0
    %139 = vmatprep.subr.mxu0 0.0
    %140 = vmatpush1.msra.mxu0 0.0
    %141 = vmatprep.subr.mxu0 0.0
    %142 = vmatpush1.msra.mxu0 0.0
    %143 = vmatprep.subr.mxu0 0.0
    %144 = vmatpush1.msra.mxu0 0.0
    %145 = vmatprep.subr.mxu0 0.0
    %146 = vmatpush1.msra.mxu0 0.0
    %147 = vmatprep.mubr.f32.mxu0 0.0
    %148 = vmatmul.mubr.f32.gmra.mrb[0].mxu0 %v81
    %v149 = vpop.f32.mrb[0].mxu0
    %v150 = vadd.f32 0.0, %v149
    %v151 = vpop.f32.mrb[0].mxu0
    %152 = vdwg.mxu0
    %v153 = vadd.f32 %v76, %v150
    %vm154 = vcmask 261120
    %155 = vst.msk [vmem:[#allocation2] sm:$0xff] %vm154, %v153
    // Predicated region
    $region42: #{tpu_custom_call.1} parent=1 // pred_check
      %p156 = pneg %p70
    $region43: #{tpu_custom_call.1} parent=1 // pred_check_branch
      %158 = sbr.rel (%p156) target = $region45
    $region44: #{tpu_custom_call.1} parent=1 // pred_region
      %v159 = vld [vmem:[#allocation8] sm:$0xff]
      %v160 = vld [vmem:[#allocation2] sm:$0xff]
      %162 = vrot.lane.b32.xlu0 %v160, 32
      %v163 = vpop.permute.xlu0 %162
      %v165 = vsel %vm154, %v159, %v163
      %v166 = vld [vmem:[#allocation9] sm:$0xff]
      %v167 = vld [vmem:[#allocation9 + $0x8] sm:$0xff]
      %v168 = vld [vmem:[#allocation9 + $0x10] sm:$0xff]
      %v169 = vld [vmem:[#allocation9 + $0x18] sm:$0xff]
      %v170 = vld [vmem:[#allocation9 + $0x20] sm:$0xff]
      %v171 = vld [vmem:[#allocation9 + $0x28] sm:$0xff]
      %v172 = vld [vmem:[#allocation9 + $0x30] sm:$0xff]
      %v173 = vld [vmem:[#allocation9 + $0x38] sm:$0xff]
      %v174 = vld [vmem:[%s4] sm:$0x1]
      %v176 = vlaneseq
      %v177 = vshrl.u32 %v176, 7
      %v178 = vsub.s32 0, %v177
      %v179 = vrot.slane %v174, %v178
      %vm181 = vcmask 523264
      %v183 = vsel %vm181, %v165, 0
      %185 = vmatprep.subr.mxu0 0.0
      %186 = vmatpush1.msra.mxu0 %v166
      %187 = vmatprep.subr.mxu0 0.0
      %188 = vmatpush1.msra.mxu0 %v167
      %189 = vmatprep.subr.mxu0 0.0
      %190 = vmatpush1.msra.mxu0 %v168
      %191 = vmatprep.subr.mxu0 0.0
      %192 = vmatpush1.msra.mxu0 %v169
      %193 = vmatprep.subr.mxu0 0.0
      %194 = vmatpush1.msra.mxu0 %v170
      %195 = vmatprep.subr.mxu0 0.0
      %196 = vmatpush1.msra.mxu0 %v171
      %197 = vmatprep.subr.mxu0 0.0
      %198 = vmatpush1.msra.mxu0 %v172
      %199 = vmatprep.subr.mxu0 0.0
      %200 = vmatpush1.msra.mxu0 %v173
      %201 = vmatprep.subr.mxu0 0.0
      %202 = vmatpush1.msra.mxu0 0.0
      %203 = vmatprep.subr.mxu0 0.0
      %204 = vmatpush1.msra.mxu0 0.0
      %205 = vmatprep.subr.mxu0 0.0
      %206 = vmatpush1.msra.mxu0 0.0
      %207 = vmatprep.subr.mxu0 0.0
      %208 = vmatpush1.msra.mxu0 0.0
      %209 = vmatprep.subr.mxu0 0.0
      %210 = vmatpush1.msra.mxu0 0.0
      %211 = vmatprep.subr.mxu0 0.0
      %212 = vmatpush1.msra.mxu0 0.0
      %213 = vmatprep.subr.mxu0 0.0
      %214 = vmatpush1.msra.mxu0 0.0
      %215 = vmatprep.subr.mxu0 0.0
      %216 = vmatpush1.msra.mxu0 0.0
      %217 = vmatprep.subr.mxu0 0.0
      %218 = vmatpush1.msra.mxu0 0.0
      %219 = vmatprep.subr.mxu0 0.0
      %220 = vmatpush1.msra.mxu0 0.0
      %221 = vmatprep.subr.mxu0 0.0
      %222 = vmatpush1.msra.mxu0 0.0
      %223 = vmatprep.subr.mxu0 0.0
      %224 = vmatpush1.msra.mxu0 0.0
      %225 = vmatprep.subr.mxu0 0.0
      %226 = vmatpush1.msra.mxu0 0.0
      %227 = vmatprep.subr.mxu0 0.0
      %228 = vmatpush1.msra.mxu0 0.0
      %229 = vmatprep.subr.mxu0 0.0
      %230 = vmatpush1.msra.mxu0 0.0
      %231 = vmatprep.subr.mxu0 0.0
      %232 = vmatpush1.msra.mxu0 0.0
      %233 = vmatprep.subr.mxu0 0.0
      %234 = vmatpush1.msra.mxu0 0.0
      %235 = vmatprep.subr.mxu0 0.0
      %236 = vmatpush1.msra.mxu0 0.0
      %237 = vmatprep.subr.mxu0 0.0
      %238 = vmatpush1.msra.mxu0 0.0
      %239 = vmatprep.subr.mxu0 0.0
      %240 = vmatpush1.msra.mxu0 0.0
      %241 = vmatprep.subr.mxu0 0.0
      %242 = vmatpush1.msra.mxu0 0.0
      %243 = vmatprep.subr.mxu0 0.0
      %244 = vmatpush1.msra.mxu0 0.0
      %245 = vmatprep.subr.mxu0 0.0
      %246 = vmatpush1.msra.mxu0 0.0
      %247 = vmatprep.subr.mxu0 0.0
      %248 = vmatpush1.msra.mxu0 0.0
      %249 = vmatprep.mubr.f32.mxu0 0.0
      %250 = vmatmul.mubr.f32.gmra.mrb[0].mxu0 %v183
      %v251 = vpop.f32.mrb[0].mxu0
      %v252 = vadd.f32 %v179, %v251
      %v253 = vpop.f32.mrb[0].mxu0
      %254 = vdwg.mxu0
      %v255 = vmax.f32 %v252, 0.0
      %256 = vst [vmem:[#allocation11] sm:$0xff] %v255
    $region45: #{tpu_custom_call.1} parent=1 // pred_fallthru
      _
    // Predicated region
    $region46: #{tpu_custom_call.1} parent=1 // pred_check
      _
    $region47: #{tpu_custom_call.1} parent=1 // pred_check_branch
      %258 = sbr.rel (0) target = $region49
    $region48: #{tpu_custom_call.1} parent=1 // pred_region
      %s260 = ssub.s32 128, 128
      %261 = vsyncadd [#allocation5], %s260
      %s263 = sshll.u32 [#allocation11], 4
      %s264 = int_to_ptr.vmem [resolvable:$true] %s263
      %266 = dma.vmem_to_hbm [thread:$0]  %s264, 128, %s5, [#allocation5]
    $region49: #{tpu_custom_call.1} parent=1 // pred_fallthru
      _
    // Predicated region
    $region50: #{tpu_custom_call.1} parent=1 // pred_check
      _
    $region51: #{tpu_custom_call.1} parent=1 // pred_check_branch
      %268 = sbr.rel (0) target = $region53
    $region52: #{tpu_custom_call.1} parent=1 // pred_region
      %269 = dma.done [#allocation5], 128
    $region53: #{tpu_custom_call.1} parent=1 // pred_fallthru
      _
    %270 = vsyncpa [#allocation4], 1
    %271 = vsyncpa [#allocation7], 1
    %272 = vsyncpa [#allocation10], 1
    %273 = vsyncpa [#allocation5], 1

</llo_original>
